<compile_context>
chip_gen: v6e
topology: v6e:2x2x1
jax: 0.10.0
libtpu: 0.0.40
codegen_flags: <defaults>
</compile_context>

<pallas_src>
import functools
import math

import jax
import jax.numpy as jnp
from jax.experimental import pallas as pl
from jax.experimental.pallas import tpu as pltpu

_LANE = 128
_SUBLANE = 8
_TARGET_BLOCK_BYTES = 4 * 1024 * 1024      # ~4 MiB per x block
_VMEM_LIMIT_BYTES = 32 * 1024 * 1024       # safe on v5e/v6e/v7x, > every default


def _bias_kernel_rescale(x_ref, b_ref, inv_s_ref, o_ref, *, norm: bool):
    # Compute in f32 so a bf16 x still sees an f32 1/scale multiply.
    x = x_ref[...].astype(jnp.float32)
    b = b_ref[...].astype(jnp.float32)          # (1, td) -> broadcasts over rows
    biased = x - b if norm else x + b
    o_ref[...] = (biased * inv_s_ref[...]).astype(o_ref.dtype)


def _bias_kernel_plain(x_ref, b_ref, o_ref, *, norm: bool):
    x = x_ref[...]
    b = b_ref[...]
    biased = x - b if norm else x + b
    o_ref[...] = biased.astype(o_ref.dtype)


def bias_layer_forward(x, bias, scale, *, norm: bool, rescale: bool = False,
                       target_block_bytes: int = _TARGET_BLOCK_BYTES):
    """x: (B, ...); bias/scale broadcast over the batch dim. norm/rescale static."""
    B = x.shape[0]
    D = math.prod(x.shape[1:])            # static Python int, no device sync
    itemsize = jnp.dtype(x.dtype).itemsize
    row_bytes = D * itemsize

    x2 = x.reshape(B, D)
    b2 = bias.reshape(1, D)

    operands = [x2, b2]
    if rescale:
        # Precompute exact 1/scale once, keep it in f32 for accuracy.
        inv_s2 = (1.0 / scale.reshape(1, D)).astype(jnp.float32)
        operands.append(inv_s2)
        kernel = functools.partial(_bias_kernel_rescale, norm=norm)
    else:
        kernel = functools.partial(_bias_kernel_plain, norm=norm)

    # Smallest legal row-tile: multiple of 8 sublanes, or the full batch if B < 8.
    min_tb = B if B < _SUBLANE else _SUBLANE

    if min_tb * row_bytes > target_block_bytes and D > _LANE:
        # Very wide D: even the minimal row tile overshoots the byte target.
        # Tile the lane axis too (128-aligned), 2-D fully-parallel grid.
        tb = min_tb
        td = max(_LANE,
                 (target_block_bytes // (tb * itemsize)) // _LANE * _LANE)
        td = min(td, D)
        grid = (pl.cdiv(B, tb), pl.cdiv(D, td))
        x_spec = pl.BlockSpec((tb, td), lambda i, j: (i, j))
        p_spec = pl.BlockSpec((1, td), lambda i, j: (0, j))
        out_spec = pl.BlockSpec((tb, td), lambda i, j: (i, j))
        dims = ("parallel", "parallel")
    else:
        # Common case: batch-tiled, full (unpadded) D as the lane dim.
        tb = max(min_tb,
                 (target_block_bytes // row_bytes) // _SUBLANE * _SUBLANE)
        # Keep >= ~4 row tiles when B allows (v7x megacore + pipeline overlap).
        if B >= 4 * _SUBLANE:
            tb = min(tb, max(_SUBLANE, ((B // 4) // _SUBLANE) * _SUBLANE))
        if tb >= B:
            tb = B                          # single full-height block is legal
        grid = (pl.cdiv(B, tb),)
        x_spec = pl.BlockSpec((tb, D), lambda i: (i, 0))
        p_spec = pl.BlockSpec((1, D), lambda i: (0, 0))
        out_spec = pl.BlockSpec((tb, D), lambda i: (i, 0))
        dims = ("parallel",)

    in_specs = [x_spec, p_spec] + ([p_spec] if rescale else [])

    param_bytes = D * itemsize + (D * 4 if rescale else 0)
    cost = pl.CostEstimate(
        flops=B * D * (2 if rescale else 1),
        transcendentals=0,
        bytes_accessed=2 * B * D * itemsize + param_bytes,
    )

    out2 = pl.pallas_call(
        kernel,
        out_shape=jax.ShapeDtypeStruct((B, D), x.dtype),
        grid_spec=pltpu.PrefetchScalarGridSpec(
            num_scalar_prefetch=0,
            grid=grid,
            in_specs=in_specs,
            out_specs=out_spec,
        ),
        compiler_params=pltpu.CompilerParams(
            dimension_semantics=dims,
            vmem_limit_bytes=_VMEM_LIMIT_BYTES,
        ),
        cost_estimate=cost,
    )(*operands)

    return out2.reshape(x.shape)


if __name__ == "__main__":
    key = jax.random.PRNGKey(0)
    kx, kb, ks = jax.random.split(key, 3)

    B, C, H, W = 2, 4, 16, 16
    x = jax.random.normal(kx, (B, C, H, W), dtype=jnp.float32)
    init_bias = jax.random.normal(kb, (C, H, W), dtype=jnp.float32)
    init_scale = jax.random.uniform(ks, (C, H, W), dtype=jnp.float32,
                                    minval=0.5, maxval=1.5)

    # norm=True, rescale=True
    out = jax.block_until_ready(
        bias_layer_forward(x, init_bias, init_scale, norm=True, rescale=True))
    ref = (x - init_bias[None]) / init_scale[None]
    assert jnp.allclose(out, ref, atol=1e-5, rtol=1e-5), \
        "mismatch (norm=True, rescale=True)"

    # norm=False, rescale=False (scale operand not passed to the kernel)
    out2 = jax.block_until_ready(
        bias_layer_forward(x, init_bias, init_scale, norm=False, rescale=False))
    assert jnp.allclose(out2, x + init_bias[None], atol=1e-6), \
        "mismatch (norm=False, rescale=False)"

    # norm=True, rescale=False
    out3 = jax.block_until_ready(
        bias_layer_forward(x, init_bias, init_scale, norm=True, rescale=False))
    assert jnp.allclose(out3, x - init_bias[None], atol=1e-6), \
        "mismatch (norm=True, rescale=False)"

    # Exercise the wide-D code path (2-D grid + ragged lane edge, D % 128 != 0)
    # at a small shape by shrinking the per-block byte target.
    C2, H2, W2 = 8, 32, 33                 # D = 8448, not a multiple of 128
    kx2, kb2, ks2 = jax.random.split(ks, 3)
    x_w = jax.random.normal(kx2, (4, C2, H2, W2), dtype=jnp.float32)
    b_w = jax.random.normal(kb2, (C2, H2, W2), dtype=jnp.float32)
    s_w = jax.random.uniform(ks2, (C2, H2, W2), dtype=jnp.float32,
                             minval=0.5, maxval=1.5)
    out_w = jax.block_until_ready(
        bias_layer_forward(x_w, b_w, s_w, norm=True, rescale=True,
                           target_block_bytes=16 * 1024))
    ref_w = (x_w - b_w[None]) / s_w[None]
    assert jnp.allclose(out_w, ref_w, atol=1e-5, rtol=1e-5), \
        "mismatch (wide-D tiled path)"

    print("KERNEL_OK")
</pallas_src>

<mosaic_0001>
module attributes {stable_mosaic.version = 11 : i64} {
  func.func @_bias_kernel_rescale(%arg0: i32, %arg1: memref<2x1024xf32, #tpu.memory_space<vmem>>, %arg2: memref<1x1024xf32, #tpu.memory_space<vmem>>, %arg3: memref<1x1024xf32, #tpu.memory_space<vmem>>, %arg4: memref<2x1024xf32, #tpu.memory_space<vmem>>) attributes {dimension_semantics = [#tpu.dimension_semantics<parallel>], iteration_bounds = array<i64: 1>, scalar_prefetch = 0 : i64, scratch_operands = 0 : i64, tpu.core_type = #tpu.core_type<tc>, window_params = [{transform_indices = @transform_0, window_bounds = array<i64: 2, 1024>}, {pipeline_mode = #tpu.pipeline_mode<synchronous>, transform_indices = @transform_1, window_bounds = array<i64: 1, 1024>}, {pipeline_mode = #tpu.pipeline_mode<synchronous>, transform_indices = @transform_2, window_bounds = array<i64: 1, 1024>}, {transform_indices = @transform_3, window_bounds = array<i64: 2, 1024>}]} {
    %c0 = arith.constant 0 : index
    %c0_0 = arith.constant 0 : index
    %0 = vector.load %arg1[%c0, %c0_0] : memref<2x1024xf32, #tpu.memory_space<vmem>>, vector<2x1024xf32>
    %c0_1 = arith.constant 0 : index
    %c0_2 = arith.constant 0 : index
    %1 = vector.load %arg2[%c0_1, %c0_2] : memref<1x1024xf32, #tpu.memory_space<vmem>>, vector<1x1024xf32>
    %2 = vector.broadcast %1 : vector<1x1024xf32> to vector<2x1024xf32>
    %3 = arith.subf %0, %2 : vector<2x1024xf32>
    %c0_3 = arith.constant 0 : index
    %c0_4 = arith.constant 0 : index
    %4 = vector.load %arg3[%c0_3, %c0_4] : memref<1x1024xf32, #tpu.memory_space<vmem>>, vector<1x1024xf32>
    %5 = vector.broadcast %4 : vector<1x1024xf32> to vector<2x1024xf32>
    %6 = arith.mulf %3, %5 : vector<2x1024xf32>
    %c0_5 = arith.constant 0 : index
    %c0_6 = arith.constant 0 : index
    %7 = vector.load %arg4[%c0_5, %c0_6] : memref<2x1024xf32, #tpu.memory_space<vmem>>, vector<2x1024xf32>
    tpu.vector_store %arg4[%c0_5, %c0_6], %6 {strides = array<i32>} : memref<2x1024xf32, #tpu.memory_space<vmem>>, vector<2x1024xf32>,
    return
  }
  func.func @transform_0(%arg0: i32) -> (i32, i32) {
    %c0_i32 = arith.constant 0 : i32
    %c0_i32_0 = arith.constant 0 : i32
    return %arg0, %c0_i32 : i32, i32
  }
  func.func @transform_1(%arg0: i32) -> (i32, i32) {
    %c0_i32 = arith.constant 0 : i32
    %c0_i32_0 = arith.constant 0 : i32
    %c0_i32_1 = arith.constant 0 : i32
    return %c0_i32, %c0_i32_0 : i32, i32
  }
  func.func @transform_2(%arg0: i32) -> (i32, i32) {
    %c0_i32 = arith.constant 0 : i32
    %c0_i32_0 = arith.constant 0 : i32
    %c0_i32_1 = arith.constant 0 : i32
    return %c0_i32, %c0_i32_0 : i32, i32
  }
  func.func @transform_3(%arg0: i32) -> (i32, i32) {
    %c0_i32 = arith.constant 0 : i32
    %c0_i32_0 = arith.constant 0 : i32
    return %arg0, %c0_i32 : i32, i32
  }
}

</mosaic_0001>

<llo_original>
// kernel: tpu_custom_call.1
$region0: #{tpu_custom_call.1}
  #allocation0 [shape = 'u32[]', space=smem, size = 0x4, offset = 0x4, fixed_abs, tag = 'smem constant byte address 0x4 - core index']
  #allocation1 [shape = 'u32[144,128]{1,0:T(1,128)}', space=vmem, size = 0x12000, scoped, tag = 'internal scratch']
  %s0 = inlined_call_operand.hbm [shape: f32[2,1024], index: 0, kind: input, shape index: {}]
  %s1 = inlined_call_operand.hbm [shape: f32[1,1024], index: 1, kind: input, shape index: {}]
  %s2 = inlined_call_operand.hbm [shape: f32[1,1024], index: 2, kind: input, shape index: {}]
  %s3 = inlined_call_operand.hbm [shape: f32[2,1024], index: 3, kind: output, shape index: {}]
  %s4 = sld [smem:[#allocation0]]
  $region34: #{tpu_custom_call.1} parent=0
    _
  %s6 = ssub.s32 1, %s4
  %s7 = scalar_select 0, %s6, %s4
  $region1: #{tpu_custom_call.1} parent=0
    #allocation2 [shape = 'u8[8192]{0}', space=vmem, size = 0x2000, scoped, tag = 'input window, operand 0, single buffered']
    #allocation3 [shape = 's32[1]{0}', space=sflag, size = 0x4, scoped, tag = 'scoped memory for tpu_custom_call.1']
    #allocation4 [shape = 's32[1]{0}', space=sflag, size = 0x4, scoped, tag = 'scoped memory for tpu_custom_call.1']
    #allocation5 [shape = 'u8[4096]{0}', space=vmem, size = 0x1000, scoped, tag = 'input window, operand 1, single buffered']
    #allocation6 [shape = 's32[1]{0}', space=sflag, size = 0x4, scoped, tag = 'scoped memory for tpu_custom_call.1']
    #allocation7 [shape = 'u8[4096]{0}', space=vmem, size = 0x1000, scoped, tag = 'input window, operand 2, single buffered']
    #allocation8 [shape = 'u8[8192]{0}', space=vmem, size = 0x2000, scoped, tag = 'output window, operand 0, single buffered']
    %8 = vsyncpa [#allocation3], 0
    %9 = vsyncpa [#allocation6], 0
    %10 = vsyncpa [#allocation4], 0
    // Predicated region
    $region2: #{tpu_custom_call.1} parent=1 // pred_check
      _
    $region3: #{tpu_custom_call.1} parent=1 // pred_check_branch
      %12 = sbr.rel (0) target = $region5
    $region4: #{tpu_custom_call.1} parent=1 // pred_region
      %s14 = ssub.s32 256, 256
      %15 = vsyncadd [#allocation3], %s14
      %s17 = sshll.u32 [#allocation2], 4
      %s18 = int_to_ptr.vmem [resolvable:$true] %s17
      %20 = dma.hbm_to_vmem [thread:$0]  %s0, 256, %s18, [#allocation3]
    $region5: #{tpu_custom_call.1} parent=1 // pred_fallthru
      _
    // Predicated region
    $region6: #{tpu_custom_call.1} parent=1 // pred_check
      _
    $region7: #{tpu_custom_call.1} parent=1 // pred_check_branch
      %22 = sbr.rel (0) target = $region9
    $region8: #{tpu_custom_call.1} parent=1 // pred_region
      %s24 = ssub.s32 128, 128
      %25 = vsyncadd [#allocation6], %s24
      %s27 = sshll.u32 [#allocation5], 4
      %s28 = int_to_ptr.vmem [resolvable:$true] %s27
      %30 = dma.hbm_to_vmem [thread:$0]  %s1, 128, %s28, [#allocation6]
    $region9: #{tpu_custom_call.1} parent=1 // pred_fallthru
      _
    // Predicated region
    $region10: #{tpu_custom_call.1} parent=1 // pred_check
      _
    $region11: #{tpu_custom_call.1} parent=1 // pred_check_branch
      %32 = sbr.rel (0) target = $region13
    $region12: #{tpu_custom_call.1} parent=1 // pred_region
      %s34 = ssub.s32 128, 128
      %35 = vsyncadd [#allocation6], %s34
      %s37 = sshll.u32 [#allocation7], 4
      %s38 = int_to_ptr.vmem [resolvable:$true] %s37
      %40 = dma.hbm_to_vmem [thread:$0]  %s2, 128, %s38, [#allocation6]
    $region13: #{tpu_custom_call.1} parent=1 // pred_fallthru
      _
    // Predicated region
    $region14: #{tpu_custom_call.1} parent=1 // pred_check
      _
    $region15: #{tpu_custom_call.1} parent=1 // pred_check_branch
      %42 = sbr.rel (0) target = $region17
    $region16: #{tpu_custom_call.1} parent=1 // pred_region
      %43 = dma.done [#allocation3], 256
    $region17: #{tpu_custom_call.1} parent=1 // pred_fallthru
      _
    // Predicated region
    $region18: #{tpu_custom_call.1} parent=1 // pred_check
      _
    $region19: #{tpu_custom_call.1} parent=1 // pred_check_branch
      %45 = sbr.rel (0) target = $region21
    $region20: #{tpu_custom_call.1} parent=1 // pred_region
      %46 = dma.done [#allocation6], 128
    $region21: #{tpu_custom_call.1} parent=1 // pred_fallthru
      _
    // Predicated region
    $region22: #{tpu_custom_call.1} parent=1 // pred_check
      _
    $region23: #{tpu_custom_call.1} parent=1 // pred_check_branch
      %48 = sbr.rel (0) target = $region25
    $region24: #{tpu_custom_call.1} parent=1 // pred_region
      %49 = dma.done [#allocation6], 128
    $region25: #{tpu_custom_call.1} parent=1 // pred_fallthru
      _
    %v50 = vld [vmem:[#allocation2] sm:$0xff]
    %v51 = vld [vmem:[#allocation2 + $0x8] sm:$0xff]
    %v52 = vld [vmem:[#allocation5] sm:$0xff]
    %v54 = vlaneseq
    %v55 = vshrl.u32 %v54, 7
    %v56 = vsub.s32 0, %v55
    %v57 = vrot.slane %v52, %v56
    %v58 = vlaneseq
    %v59 = vshrl.u32 %v58, 7
    %v60 = vsub.s32 1, %v59
    %v61 = vrot.slane %v52, %v60
    %v62 = vlaneseq
    %v63 = vshrl.u32 %v62, 7
    %v64 = vsub.s32 2, %v63
    %v65 = vrot.slane %v52, %v64
    %v66 = vlaneseq
    %v67 = vshrl.u32 %v66, 7
    %v68 = vsub.s32 3, %v67
    %v69 = vrot.slane %v52, %v68
    %v70 = vlaneseq
    %v71 = vshrl.u32 %v70, 7
    %v72 = vsub.s32 4, %v71
    %v73 = vrot.slane %v52, %v72
    %v74 = vlaneseq
    %v75 = vshrl.u32 %v74, 7
    %v76 = vsub.s32 5, %v75
    %v77 = vrot.slane %v52, %v76
    %v78 = vlaneseq
    %v79 = vshrl.u32 %v78, 7
    %v80 = vsub.s32 6, %v79
    %v81 = vrot.slane %v52, %v80
    %v82 = vlaneseq
    %v83 = vshrl.u32 %v82, 7
    %v84 = vsub.s32 7, %v83
    %v85 = vrot.slane %v52, %v84
    %v86 = vcombine.low %v57, %v61
    %v87 = vcombine.low %v65, %v69
    %v89 = vunpack.c.l.s4 1983009808
    %v90 = vunpack.c.0.s8 %v89
    %v91 = vlaneseq
    %v92 = vshrl.u32 %v91, 7
    %v93 = vsub.s32 %v90, %v92
    %v94 = vrot.slane %v86, %v93
    %v96 = vunpack.c.l.s4 1983009808
    %v97 = vunpack.c.0.s8 %v96
    %v98 = vlaneseq
    %v99 = vshrl.u32 %v98, 7
    %v100 = vsub.s32 %v97, %v99
    %v101 = vrot.slane %v87, %v100
    %v102 = vcombine.low %v94, %v101
    %v103 = vcombine.low %v73, %v77
    %v104 = vcombine.low %v81, %v85
    %v106 = vunpack.c.l.s4 1983009808
    %v107 = vunpack.c.0.s8 %v106
    %v108 = vlaneseq
    %v109 = vshrl.u32 %v108, 7
    %v110 = vsub.s32 %v107, %v109
    %v111 = vrot.slane %v103, %v110
    %v113 = vunpack.c.l.s4 1983009808
    %v114 = vunpack.c.0.s8 %v113
    %v115 = vlaneseq
    %v116 = vshrl.u32 %v115, 7
    %v117 = vsub.s32 %v114, %v116
    %v118 = vrot.slane %v104, %v117
    %v119 = vcombine.low %v111, %v118
    %v122 = vsub.f32 %v50, %v102
    %v123 = vsub.f32 %v51, %v119
    %v124 = vld [vmem:[#allocation7] sm:$0xff]
    %v126 = vlaneseq
    %v127 = vshrl.u32 %v126, 7
    %v128 = vsub.s32 0, %v127
    %v129 = vrot.slane %v124, %v128
    %v130 = vlaneseq
    %v131 = vshrl.u32 %v130, 7
    %v132 = vsub.s32 1, %v131
    %v133 = vrot.slane %v124, %v132
    %v134 = vlaneseq
    %v135 = vshrl.u32 %v134, 7
    %v136 = vsub.s32 2, %v135
    %v137 = vrot.slane %v124, %v136
    %v138 = vlaneseq
    %v139 = vshrl.u32 %v138, 7
    %v140 = vsub.s32 3, %v139
    %v141 = vrot.slane %v124, %v140
    %v142 = vlaneseq
    %v143 = vshrl.u32 %v142, 7
    %v144 = vsub.s32 4, %v143
    %v145 = vrot.slane %v124, %v144
    %v146 = vlaneseq
    %v147 = vshrl.u32 %v146, 7
    %v148 = vsub.s32 5, %v147
    %v149 = vrot.slane %v124, %v148
    %v150 = vlaneseq
    %v151 = vshrl.u32 %v150, 7
    %v152 = vsub.s32 6, %v151
    %v153 = vrot.slane %v124, %v152
    %v154 = vlaneseq
    %v155 = vshrl.u32 %v154, 7
    %v156 = vsub.s32 7, %v155
    %v157 = vrot.slane %v124, %v156
    %v158 = vcombine.low %v129, %v133
    %v159 = vcombine.low %v137, %v141
    %v161 = vunpack.c.l.s4 1983009808
    %v162 = vunpack.c.0.s8 %v161
    %v163 = vlaneseq
    %v164 = vshrl.u32 %v163, 7
    %v165 = vsub.s32 %v162, %v164
    %v166 = vrot.slane %v158, %v165
    %v168 = vunpack.c.l.s4 1983009808
    %v169 = vunpack.c.0.s8 %v168
    %v170 = vlaneseq
    %v171 = vshrl.u32 %v170, 7
    %v172 = vsub.s32 %v169, %v171
    %v173 = vrot.slane %v159, %v172
    %v174 = vcombine.low %v166, %v173
    %v175 = vcombine.low %v145, %v149
    %v176 = vcombine.low %v153, %v157
    %v178 = vunpack.c.l.s4 1983009808
    %v179 = vunpack.c.0.s8 %v178
    %v180 = vlaneseq
    %v181 = vshrl.u32 %v180, 7
    %v182 = vsub.s32 %v179, %v181
    %v183 = vrot.slane %v175, %v182
    %v185 = vunpack.c.l.s4 1983009808
    %v186 = vunpack.c.0.s8 %v185
    %v187 = vlaneseq
    %v188 = vshrl.u32 %v187, 7
    %v189 = vsub.s32 %v186, %v188
    %v190 = vrot.slane %v176, %v189
    %v191 = vcombine.low %v183, %v190
    %v194 = vmul.f32 %v122, %v174
    %v195 = vmul.f32 %v123, %v191
    %196 = vst [vmem:[#allocation8] sm:$0xff] %v194
    %197 = vst [vmem:[#allocation8 + $0x8] sm:$0xff] %v195
    // Predicated region
    $region26: #{tpu_custom_call.1} parent=1 // pred_check
      _
    $region27: #{tpu_custom_call.1} parent=1 // pred_check_branch
      %199 = sbr.rel (0) target = $region29
    $region28: #{tpu_custom_call.1} parent=1 // pred_region
      %s201 = ssub.s32 256, 256
      %202 = vsyncadd [#allocation4], %s201
      %s204 = sshll.u32 [#allocation8], 4
      %s205 = int_to_ptr.vmem [resolvable:$true] %s204
      %207 = dma.vmem_to_hbm [thread:$0]  %s205, 256, %s3, [#allocation4]
    $region29: #{tpu_custom_call.1} parent=1 // pred_fallthru
      _
    // Predicated region
    $region30: #{tpu_custom_call.1} parent=1 // pred_check
      _
    $region31: #{tpu_custom_call.1} parent=1 // pred_check_branch
      %209 = sbr.rel (0) target = $region33
    $region32: #{tpu_custom_call.1} parent=1 // pred_region
      %210 = dma.done [#allocation4], 256
    $region33: #{tpu_custom_call.1} parent=1 // pred_fallthru
      _
    %211 = vsyncpa [#allocation3], 1
    %212 = vsyncpa [#allocation6], 1
    %213 = vsyncpa [#allocation4], 1

</llo_original>
